<compile_context>
chip_gen: v7x
topology: tpu7x:2x2x1
jax: 0.10.0
libtpu: 0.0.40
codegen_flags: <defaults>
</compile_context>

<pallas_src>
import functools

import jax
import jax.numpy as jnp
from jax.experimental import pallas as pl
from jax.experimental.pallas import tpu as pltpu


# ----------------------------------------------------------------------------
# helpers
# ----------------------------------------------------------------------------
def _apply_activation(x, act):
    if act is None:
        return x
    if act == "relu":
        return jnp.maximum(x, 0.0)
    if act == "tanh":
        return jnp.tanh(x)
    if act == "sigmoid":
        return jax.nn.sigmoid(x)
    if act == "elu":
        return jax.nn.elu(x)
    if act == "leaky_relu":
        return jax.nn.leaky_relu(x)
    return getattr(jax.nn, act)(x)


def _pick_tile_rows(max_type_rows):
    """Adaptive node tile (node rows live on the LANE axis, so it must be a
    multiple of 128 for unmasked lane-dense stores).  Bigger tiles amortize
    the ~0.35us per-grid-step overhead on big graphs; 128 keeps padding waste
    low on small ones (where dispatch dominates anyway)."""
    if max_type_rows >= 4096:
        return 512
    if max_type_rows >= 1024:
        return 256
    # TODO(synk): add a sub-128 row-tile path (untransposed, 8-wide output)
    # for tiny single-molecule graphs where even 128-row padding dominates.
    return 128


# ----------------------------------------------------------------------------
# Pallas kernel (all node types fused; weights VMEM-resident, picked in-kernel)
# ----------------------------------------------------------------------------
def _fused_janossy_kernel(activations, compute_dtype, tile_type_ref, xT_ref,
                          *refs):
    """Transposed data layout: features on sublanes, node rows on lanes.

    Ref layout:
      tile_type_ref : (n_tiles,) int32 scalar-prefetch (SMEM) tile -> type idx
      xT_ref        : (d_in_max, TM) pooled/zero-padded input tile, compute_dtype
      refs[:-1]     : (w, b) pairs of FULL per-type stacks (VMEM-resident):
                        w : (n_types, fan_out, fan_in)  compute_dtype
                        b : (n_types, fan_out, 1)       float32
                      hidden layers first, then the stacked/padded heads.
      refs[-1]      : (head_sub, TM) float32 output tile (lane-dense).
    """
    o_ref = refs[-1]
    wb = refs[:-1]
    n_hidden = len(activations)

    t = tile_type_ref[pl.program_id(0)]            # this tile's node type
    x = xT_ref[...]                                # (d_in_max, TM) compute_dtype
    for li in range(n_hidden):
        w = wb[2 * li][t]                          # (fan_out, fan_in) compute_dtype
        b = wb[2 * li + 1][t]                      # (fan_out, 1)      f32
        x = jnp.dot(w, x, preferred_element_type=jnp.float32) + b
        x = _apply_activation(x, activations[li])  # elementwise stays f32
        x = x.astype(compute_dtype)

    wo = wb[2 * n_hidden][t]                       # (head_sub, mid)   compute_dtype
    bo = wb[2 * n_hidden + 1][t]                   # (head_sub, 1)     f32
    y = jnp.dot(wo, x, preferred_element_type=jnp.float32) + bo
    o_ref[...] = y.astype(o_ref.dtype)


# ----------------------------------------------------------------------------
# Parameter init (deterministic, torch.nn.Linear-style uniform)
# ----------------------------------------------------------------------------
def _linear_params(key, fan_in, fan_out):
    k1, k2 = jax.random.split(key)
    bound = 1.0 / (fan_in ** 0.5)
    w = jax.random.uniform(k1, (fan_in, fan_out), jnp.float32, -bound, bound)
    b = jax.random.uniform(k2, (1, fan_out), jnp.float32, -bound, bound)
    return w, b


# ----------------------------------------------------------------------------
# JanossyPooling (JAX / Pallas)
# ----------------------------------------------------------------------------
class JanossyPooling:
    def __init__(self, config, in_features, out_features=None, key=None,
                 compute_dtype=jnp.bfloat16, tile_rows=None):
        if out_features is None:
            out_features = {1: ["sigma", "epsilon", "q"],
                            2: ["k", "eq"], 3: ["k", "eq"], 4: ["k", "eq"]}
        if key is None:
            key = jax.random.PRNGKey(0)

        self.out_features = {
            lvl: (dict(zip(f, [1] * len(f))) if isinstance(f, list) else dict(f))
            for lvl, f in out_features.items()}
        self.levels = [k for k in self.out_features if k != 1]
        self.in_features = in_features
        self.compute_dtype = compute_dtype          # bf16 MXU operands by default
        if tile_rows is not None:                   # force multiple of 128
            tile_rows = max(128, -(-int(tile_rows) // 128) * 128)
        self.tile_rows = tile_rows                  # None -> adaptive

        # Parse config like esp.nn.sequential._Sequential: ints -> Linear
        # layers, strings -> activation applied after the preceding Linear.
        dims, acts = [], []
        for entry in config:
            if isinstance(entry, int):
                dims.append(entry)
                acts.append(None)
            else:
                acts[-1] = entry
        self.hidden_dims = dims
        self.activations = acts
        self.mid_features = dims[-1]

        self.type_order = [1] + list(self.levels)
        self.n_types = len(self.type_order)
        self.d_in_max = in_features * max(self.type_order)

        itemsize = jnp.dtype(self.compute_dtype).itemsize
        sub_mult = 8 * max(1, 4 // itemsize)        # f32 -> 8 rows, bf16 -> 16
        max_width = max(sum(self.out_features[t].values())
                        for t in self.type_order)
        self.head_sub = -(-max_width // sub_mult) * sub_mult

        # --- Per-type params (unpadded, f32, torch orientation) — also used
        #     by the reference implementation. ---
        self.params = {}
        for t in self.type_order:
            d_in = in_features * t
            hidden, prev = [], d_in
            for d in dims:
                key, sub = jax.random.split(key)
                hidden.append(_linear_params(sub, prev, d))
                prev = d
            ws, bs = [], []
            for _feat, fdim in self.out_features[t].items():
                key, sub = jax.random.split(key)
                w, b = _linear_params(sub, self.mid_features, fdim)
                ws.append(w)
                bs.append(b)
            self.params[t] = (hidden,
                              (jnp.concatenate(ws, axis=1),
                               jnp.concatenate(bs, axis=1)))

        # --- Fused per-type weight stacks (TRANSPOSED for the kernel):
        #       hidden li: w (n_types, fan_out, fan_in[-padded for li==0])
        #       heads    : w (n_types, head_sub, mid)  (zero head rows padded)
        #     Weights in compute_dtype (bf16), biases stay float32. ---
        stacked = []
        for li in range(len(dims)):
            ws, bs = [], []
            for t in self.type_order:
                w, b = self.params[t][0][li]
                wt = w.T                                  # (fan_out, fan_in)
                if li == 0:
                    wt = jnp.pad(wt, ((0, 0), (0, self.d_in_max - wt.shape[1])))
                ws.append(wt)
                bs.append(b.T)                            # (fan_out, 1)
            stacked.append((jnp.stack(ws).astype(self.compute_dtype),
                            jnp.stack(bs).astype(jnp.float32)))
        wos, bos = [], []
        for t in self.type_order:
            wo, bo = self.params[t][1]
            wot = jnp.pad(wo.T, ((0, self.head_sub - wo.shape[1]), (0, 0)))
            bot = jnp.pad(bo.T, ((0, self.head_sub - bo.shape[1]), (0, 0)))
            wos.append(wot)
            bos.append(bot)
        stacked.append((jnp.stack(wos).astype(self.compute_dtype),
                        jnp.stack(bos).astype(jnp.float32)))
        self.stacked_params = stacked

        # jit the whole forward (gathers + pool + pad + pallas_call + slicing).
        self._jit_forward = jax.jit(self._forward_impl)

    # ------------------------------------------------------------------ fused call
    def _fused_forward(self, tile_type, xT_all, n_tiles, tm):
        flat_wb = []
        for (w, b) in self.stacked_params:
            flat_wb += [w, b]

        kernel = functools.partial(_fused_janossy_kernel,
                                   tuple(self.activations), self.compute_dtype)

        # Input/output tiles are pipelined; weight stacks use full-array
        # blocks with constant index maps => fetched into VMEM once and kept
        # resident (no per-type weight DMA, no data-dependent index maps).
        x_spec = pl.BlockSpec((self.d_in_max, tm), lambda i, tt: (0, i))
        wb_specs = [pl.BlockSpec(p.shape, lambda i, tt, nd=p.ndim: (0,) * nd)
                    for p in flat_wb]
        out_spec = pl.BlockSpec((self.head_sub, tm), lambda i, tt: (0, i))

        total_cols = xT_all.shape[1]

        # Advisory cost estimate for the XLA scheduler.
        flops, trans = 0, 0
        prev = self.d_in_max
        for d, a in zip(self.hidden_dims, self.activations):
            flops += 2 * total_cols * prev * d
            if a in ("tanh", "sigmoid", "elu"):
                trans += total_cols * d
            prev = d
        flops += 2 * total_cols * prev * self.head_sub
        bytes_accessed = (int(xT_all.size) * xT_all.dtype.itemsize
                          + sum(int(p.size) * p.dtype.itemsize for p in flat_wb)
                          + total_cols * self.head_sub * 4)
        cost = pl.CostEstimate(flops=int(flops), transcendentals=int(trans),
                               bytes_accessed=int(bytes_accessed))

        out = pl.pallas_call(
            kernel,
            out_shape=jax.ShapeDtypeStruct((self.head_sub, total_cols),
                                           jnp.float32),
            grid_spec=pltpu.PrefetchScalarGridSpec(
                num_scalar_prefetch=1,
                grid=(n_tiles,),
                in_specs=[x_spec] + wb_specs,
                out_specs=out_spec,
            ),
            compiler_params=pltpu.CompilerParams(
                # Uniform work per tile => contiguous megacore split on v7x is
                # balanced to +/- 1 tile.
                dimension_semantics=("parallel",),
                vmem_limit_bytes=32 * 1024 * 1024,  # <= v7x's 64 MiB VMEM
            ),
            cost_estimate=cost,
        )(tile_type, xT_all, *flat_wb)
        return out

    # ------------------------------------------------------------------ forward
    def _forward_impl(self, h_n1, idxs):
        counts = [h_n1.shape[0] if t == 1 else idxs[t].shape[0]
                  for t in self.type_order]
        tm = (self.tile_rows if self.tile_rows is not None
              else _pick_tile_rows(max(counts)))

        xTs, padded = [], []
        for t in self.type_order:
            if t == 1:
                x = h_n1
            else:
                idx = idxs[t]
                hs = [h_n1[idx[:, r]] for r in range(t)]
                # Pre-summed Janossy pool:
                #   cat(h0..h_{t-1}) + cat(h_{t-1}..h0) == cat([h_r + h_{t-1-r}])
                x = jnp.concatenate([hs[r] + hs[t - 1 - r] for r in range(t)],
                                    axis=1)
            n_t = x.shape[0]
            pad_c = (-n_t) % tm
            xT = x.T.astype(self.compute_dtype)               # (d_in_t, n_t)
            xT = jnp.pad(xT, ((0, self.d_in_max - xT.shape[0]), (0, pad_c)))
            xTs.append(xT)
            padded.append(n_t + pad_c)
        # TODO(synk): fuse the gather+pool into the kernel (scalar-prefetched
        # member indices + VMEM-resident h) so the column-zero-padded input is
        # never materialized in HBM for atom/bond-heavy graphs.
        xT_all = jnp.concatenate(xTs, axis=1)                 # (d_in_max, total)

        tiles = [p // tm for p in padded]
        n_tiles = sum(tiles)
        tile_type = jnp.concatenate(
            [jnp.full((nt,), ti, jnp.int32) for ti, nt in enumerate(tiles)])

        out_all = self._fused_forward(tile_type, xT_all, n_tiles, tm)

        # Slice the (head_sub, total) slab back into per-type feature columns.
        # NOTE: padding rows/columns carry MLP(0) garbage and are dropped here.
        out, off = {}, 0
        for ti, t in enumerate(self.type_order):
            blk = out_all[:, off:off + counts[ti]]            # (head_sub, n_t)
            feats, row = {}, 0
            for f, d in self.out_features[t].items():
                feats[f] = blk[row:row + d, :].T              # (n_t, d)
                row += d
            out[f"n{t}"] = feats
            off += padded[ti]
        return out

    def __call__(self, h_n1, idxs):
        """h_n1: (N1, in_features) n1 (atom) representations.
        idxs: {level: (N_level, level) int32} member-atom indices per n{level}."""
        return self._jit_forward(h_n1, idxs)


# ----------------------------------------------------------------------------
# Pure-JAX reference (for correctness check)
# ----------------------------------------------------------------------------
def _ref_mlp(x, hidden, out_p, acts, compute_dtype):
    def dot(a, b):
        if compute_dtype is None:
            return jnp.dot(a, b, precision=jax.lax.Precision.HIGHEST)
        return jnp.dot(a.astype(compute_dtype), b.astype(compute_dtype),
                       preferred_element_type=jnp.float32)

    for (w, b), a in zip(hidden, acts):
        x = dot(x, w) + b
        x = _apply_activation(x, a)
    wo, bo = out_p
    return dot(x, wo) + bo


def _reference(module, h_n1, idxs, compute_dtype=None):
    out = {}
    for lvl in module.levels:
        idx = idxs[lvl]
        hs = [h_n1[idx[:, r]] for r in range(lvl)]
        x = jnp.concatenate(hs, axis=1) + jnp.concatenate(hs[::-1], axis=1)
        hidden, out_p = module.params[lvl]
        stacked = _ref_mlp(x, hidden, out_p, module.activations, compute_dtype)
        feats, col = {}, 0
        for f, d in module.out_features[lvl].items():
            feats[f] = stacked[:, col:col + d]
            col += d
        out[f"n{lvl}"] = feats
    hidden, out_p = module.params[1]
    stacked = _ref_mlp(h_n1, hidden, out_p, module.activations, compute_dtype)
    feats, col = {}, 0
    for f, d in module.out_features[1].items():
        feats[f] = stacked[:, col:col + d]
        col += d
    out["n1"] = feats
    return out


# ----------------------------------------------------------------------------
if __name__ == "__main__":
    key = jax.random.PRNGKey(0)

    in_features = 32
    config = [32, "relu", 32, "relu"]        # mid_features = 32
    n1, n2, n3, n4 = 16, 12, 10, 6           # atoms, bonds, angles, torsions

    k_h, k2, k3, k4, k_params = jax.random.split(key, 5)
    h_n1 = jax.random.normal(k_h, (n1, in_features), jnp.float32)
    idxs = {
        2: jax.random.randint(k2, (n2, 2), 0, n1, jnp.int32),
        3: jax.random.randint(k3, (n3, 3), 0, n1, jnp.int32),
        4: jax.random.randint(k4, (n4, 4), 0, n1, jnp.int32),
    }

    # Default: bf16 MXU operands, f32 accumulation/biases/activations.
    module = JanossyPooling(config, in_features, key=k_params)

    out = module(h_n1, idxs)
    jax.block_until_ready(out)

    ref_match = _reference(module, h_n1, idxs,
                           compute_dtype=module.compute_dtype)  # same operand dtype
    ref_f32 = _reference(module, h_n1, idxs, compute_dtype=None)  # full-f32 semantics
    for ntype in ref_match:
        for feat in ref_match[ntype]:
            a = out[ntype][feat]
            b = ref_match[ntype][feat]
            c = ref_f32[ntype][feat]
            assert a.shape == b.shape, (ntype, feat, a.shape, b.shape)
            # Tight: kernel vs a reference using identical bf16 operands.
            assert jnp.allclose(a, b, atol=2e-3, rtol=2e-3), (ntype, feat)
            # Loose: bf16-operand kernel vs the torch-like full-f32 reference.
            assert jnp.allclose(a, c, atol=5e-2, rtol=5e-2), (ntype, feat)

    print("KERNEL_OK")
</pallas_src>

<mosaic_0001>
module attributes {stable_mosaic.version = 11 : i64} {
  func.func @_fused_janossy_kernel(%arg0: i32, %arg1: memref<4xi32, #tpu.memory_space<smem>>, %arg2: memref<128x128xbf16, #tpu.memory_space<vmem>>, %arg3: memref<4x32x128xbf16, #tpu.memory_space<vmem>>, %arg4: memref<4x32x1xf32, #tpu.memory_space<vmem>>, %arg5: memref<4x32x32xbf16, #tpu.memory_space<vmem>>, %arg6: memref<4x32x1xf32, #tpu.memory_space<vmem>>, %arg7: memref<4x16x32xbf16, #tpu.memory_space<vmem>>, %arg8: memref<4x16x1xf32, #tpu.memory_space<vmem>>, %arg9: memref<16x128xf32, #tpu.memory_space<vmem>>) attributes {dimension_semantics = [#tpu.dimension_semantics<parallel>], iteration_bounds = array<i64: 4>, scalar_prefetch = 1 : i64, scratch_operands = 0 : i64, tpu.core_type = #tpu.core_type<tc>, window_params = [{transform_indices = @transform_0, window_bounds = array<i64: 128, 128>}, {pipeline_mode = #tpu.pipeline_mode<synchronous>, transform_indices = @transform_1, window_bounds = array<i64: 4, 32, 128>}, {pipeline_mode = #tpu.pipeline_mode<synchronous>, transform_indices = @transform_2, window_bounds = array<i64: 4, 32, 1>}, {pipeline_mode = #tpu.pipeline_mode<synchronous>, transform_indices = @transform_3, window_bounds = array<i64: 4, 32, 32>}, {pipeline_mode = #tpu.pipeline_mode<synchronous>, transform_indices = @transform_4, window_bounds = array<i64: 4, 32, 1>}, {pipeline_mode = #tpu.pipeline_mode<synchronous>, transform_indices = @transform_5, window_bounds = array<i64: 4, 16, 32>}, {pipeline_mode = #tpu.pipeline_mode<synchronous>, transform_indices = @transform_6, window_bounds = array<i64: 4, 16, 1>}, {transform_indices = @transform_7, window_bounds = array<i64: 16, 128>}]} {
    %0 = arith.index_cast %arg0 : i32 to index
    %1 = memref.load %arg1[%0] : memref<4xi32, #tpu.memory_space<smem>>
    %c0 = arith.constant 0 : index
    %c0_0 = arith.constant 0 : index
    %2 = vector.load %arg2[%c0, %c0_0] : memref<128x128xbf16, #tpu.memory_space<vmem>>, vector<128x128xbf16>
    %3 = arith.index_cast %1 : i32 to index
    %c0_1 = arith.constant 0 : index
    %c0_2 = arith.constant 0 : index
    %4 = vector.load %arg3[%3, %c0_1, %c0_2] : memref<4x32x128xbf16, #tpu.memory_space<vmem>>, vector<1x32x128xbf16>
    %5 = vector.shape_cast %4 : vector<1x32x128xbf16> to vector<32x128xbf16>
    %6 = arith.index_cast %1 : i32 to index
    %c0_3 = arith.constant 0 : index
    %c0_4 = arith.constant 0 : index
    %7 = vector.load %arg4[%6, %c0_3, %c0_4] : memref<4x32x1xf32, #tpu.memory_space<vmem>>, vector<1x32x1xf32>
    %8 = vector.shape_cast %7 : vector<1x32x1xf32> to vector<32x1xf32>
    %cst = arith.constant dense<0.000000e+00> : vector<32x128xf32>
    %9 = tpu.matmul %5, %2, %cst {dimension_numbers = #tpu.dot_dimension_numbers<[1], [0], [0], [1], [0, 0, 1, 1], [], []>} : vector<32x128xbf16>, vector<128x128xbf16>, vector<32x128xf32> -> vector<32x128xf32>
    %10 = vector.broadcast %8 : vector<32x1xf32> to vector<32x128xf32>
    %11 = arith.addf %9, %10 : vector<32x128xf32>
    %cst_5 = arith.constant 0.000000e+00 : f32
    %12 = vector.broadcast %cst_5 : f32 to vector<32x128xf32>
    %13 = arith.maximumf %11, %12 : vector<32x128xf32>
    %14 = arith.truncf %13 : vector<32x128xf32> to vector<32x128xbf16>
    %15 = arith.index_cast %1 : i32 to index
    %c0_6 = arith.constant 0 : index
    %c0_7 = arith.constant 0 : index
    %16 = vector.load %arg5[%15, %c0_6, %c0_7] : memref<4x32x32xbf16, #tpu.memory_space<vmem>>, vector<1x32x32xbf16>
    %17 = vector.shape_cast %16 : vector<1x32x32xbf16> to vector<32x32xbf16>
    %18 = arith.index_cast %1 : i32 to index
    %c0_8 = arith.constant 0 : index
    %c0_9 = arith.constant 0 : index
    %19 = vector.load %arg6[%18, %c0_8, %c0_9] : memref<4x32x1xf32, #tpu.memory_space<vmem>>, vector<1x32x1xf32>
    %20 = vector.shape_cast %19 : vector<1x32x1xf32> to vector<32x1xf32>
    %cst_10 = arith.constant dense<0.000000e+00> : vector<32x128xf32>
    %21 = tpu.matmul %17, %14, %cst_10 {dimension_numbers = #tpu.dot_dimension_numbers<[1], [0], [0], [1], [0, 0, 1, 1], [], []>} : vector<32x32xbf16>, vector<32x128xbf16>, vector<32x128xf32> -> vector<32x128xf32>
    %22 = vector.broadcast %20 : vector<32x1xf32> to vector<32x128xf32>
    %23 = arith.addf %21, %22 : vector<32x128xf32>
    %cst_11 = arith.constant 0.000000e+00 : f32
    %24 = vector.broadcast %cst_11 : f32 to vector<32x128xf32>
    %25 = arith.maximumf %23, %24 : vector<32x128xf32>
    %26 = arith.truncf %25 : vector<32x128xf32> to vector<32x128xbf16>
    %27 = arith.index_cast %1 : i32 to index
    %c0_12 = arith.constant 0 : index
    %c0_13 = arith.constant 0 : index
    %28 = vector.load %arg7[%27, %c0_12, %c0_13] : memref<4x16x32xbf16, #tpu.memory_space<vmem>>, vector<1x16x32xbf16>
    %29 = vector.shape_cast %28 : vector<1x16x32xbf16> to vector<16x32xbf16>
    %30 = arith.index_cast %1 : i32 to index
    %c0_14 = arith.constant 0 : index
    %c0_15 = arith.constant 0 : index
    %31 = vector.load %arg8[%30, %c0_14, %c0_15] : memref<4x16x1xf32, #tpu.memory_space<vmem>>, vector<1x16x1xf32>
    %32 = vector.shape_cast %31 : vector<1x16x1xf32> to vector<16x1xf32>
    %cst_16 = arith.constant dense<0.000000e+00> : vector<16x128xf32>
    %33 = tpu.matmul %29, %26, %cst_16 {dimension_numbers = #tpu.dot_dimension_numbers<[1], [0], [0], [1], [0, 0, 1, 1], [], []>} : vector<16x32xbf16>, vector<32x128xbf16>, vector<16x128xf32> -> vector<16x128xf32>
    %34 = vector.broadcast %32 : vector<16x1xf32> to vector<16x128xf32>
    %35 = arith.addf %33, %34 : vector<16x128xf32>
    %c0_17 = arith.constant 0 : index
    %c0_18 = arith.constant 0 : index
    %36 = vector.load %arg9[%c0_17, %c0_18] : memref<16x128xf32, #tpu.memory_space<vmem>>, vector<16x128xf32>
    tpu.vector_store %arg9[%c0_17, %c0_18], %35 {strides = array<i32>} : memref<16x128xf32, #tpu.memory_space<vmem>>, vector<16x128xf32>,
    return
  }
  func.func @transform_0(%arg0: i32, %arg1: memref<4xi32, #tpu.memory_space<smem>>) -> (i32, i32) {
    %c0_i32 = arith.constant 0 : i32
    %c0_i32_0 = arith.constant 0 : i32
    return %c0_i32, %arg0 : i32, i32
  }
  func.func @transform_1(%arg0: i32, %arg1: memref<4xi32, #tpu.memory_space<smem>>) -> (i32, i32, i32) {
    %c0_i32 = arith.constant 0 : i32
    %c0_i32_0 = arith.constant 0 : i32
    %c0_i32_1 = arith.constant 0 : i32
    %c0_i32_2 = arith.constant 0 : i32
    return %c0_i32, %c0_i32_0, %c0_i32_1 : i32, i32, i32
  }
  func.func @transform_2(%arg0: i32, %arg1: memref<4xi32, #tpu.memory_space<smem>>) -> (i32, i32, i32) {
    %c0_i32 = arith.constant 0 : i32
    %c0_i32_0 = arith.constant 0 : i32
    %c0_i32_1 = arith.constant 0 : i32
    %c0_i32_2 = arith.constant 0 : i32
    return %c0_i32, %c0_i32_0, %c0_i32_1 : i32, i32, i32
  }
  func.func @transform_3(%arg0: i32, %arg1: memref<4xi32, #tpu.memory_space<smem>>) -> (i32, i32, i32) {
    %c0_i32 = arith.constant 0 : i32
    %c0_i32_0 = arith.constant 0 : i32
    %c0_i32_1 = arith.constant 0 : i32
    %c0_i32_2 = arith.constant 0 : i32
    return %c0_i32, %c0_i32_0, %c0_i32_1 : i32, i32, i32
  }
  func.func @transform_4(%arg0: i32, %arg1: memref<4xi32, #tpu.memory_space<smem>>) -> (i32, i32, i32) {
    %c0_i32 = arith.constant 0 : i32
    %c0_i32_0 = arith.constant 0 : i32
    %c0_i32_1 = arith.constant 0 : i32
    %c0_i32_2 = arith.constant 0 : i32
    return %c0_i32, %c0_i32_0, %c0_i32_1 : i32, i32, i32
  }
  func.func @transform_5(%arg0: i32, %arg1: memref<4xi32, #tpu.memory_space<smem>>) -> (i32, i32, i32) {
    %c0_i32 = arith.constant 0 : i32
    %c0_i32_0 = arith.constant 0 : i32
    %c0_i32_1 = arith.constant 0 : i32
    %c0_i32_2 = arith.constant 0 : i32
    return %c0_i32, %c0_i32_0, %c0_i32_1 : i32, i32, i32
  }
  func.func @transform_6(%arg0: i32, %arg1: memref<4xi32, #tpu.memory_space<smem>>) -> (i32, i32, i32) {
    %c0_i32 = arith.constant 0 : i32
    %c0_i32_0 = arith.constant 0 : i32
    %c0_i32_1 = arith.constant 0 : i32
    %c0_i32_2 = arith.constant 0 : i32
    return %c0_i32, %c0_i32_0, %c0_i32_1 : i32, i32, i32
  }
  func.func @transform_7(%arg0: i32, %arg1: memref<4xi32, #tpu.memory_space<smem>>) -> (i32, i32) {
    %c0_i32 = arith.constant 0 : i32
    %c0_i32_0 = arith.constant 0 : i32
    return %c0_i32, %arg0 : i32, i32
  }
}

</mosaic_0001>

<llo_original>
// kernel: _forward_impl.1
$region0: #{_forward_impl.1}
  #allocation0 [shape = 'u32[]', space=smem, size = 0x4, offset = 0x4, fixed_abs, tag = 'smem constant byte address 0x4 - core index']
  #allocation1 [shape = 'u32[144,128]{1,0:T(1,128)}', space=vmem, size = 0x12000, scoped, tag = 'internal scratch']
  #allocation2 [shape = 's32[1]{0}', space=sflag, size = 0x4, scoped, tag = 'scoped memory for _forward_impl.1']
  #allocation3 [shape = 'u8[512]{0}', space=smem, size = 0x200, scoped, tag = 'prefetched SMEM operand 0']
  %s0 = inlined_call_operand.vmem [shape: s32[4], index: 0, kind: input, shape index: {}]
  %s1 = inlined_call_operand.vmem [shape: bf16[128,512], index: 1, kind: input, shape index: {}]
  %s2 = inlined_call_operand.vmem [shape: bf16[4,32,128], index: 2, kind: input, shape index: {}]
  %s3 = inlined_call_operand.vmem [shape: f32[4,32,1], index: 3, kind: input, shape index: {}]
  %s4 = inlined_call_operand.vmem [shape: bf16[4,32,32], index: 4, kind: input, shape index: {}]
  %s5 = inlined_call_operand.vmem [shape: f32[4,32,1], index: 5, kind: input, shape index: {}]
  %s6 = inlined_call_operand.vmem [shape: bf16[4,16,32], index: 6, kind: input, shape index: {}]
  %s7 = inlined_call_operand.vmem [shape: f32[4,16,1], index: 7, kind: input, shape index: {}]
  %s8 = inlined_call_operand.vmem [shape: f32[16,512], index: 8, kind: output, shape index: {}]
  %s9 = sld [smem:[#allocation0]]
  $region136: #{_forward_impl.1} parent=0
    _
  %s11 = ssub.s32 1, %s9
  %s12 = scalar_select 0, %s11, %s9
  %s13 = sshll.u32 %s0, 4
  %s14 = int_to_ptr.vmem [resolvable:$true] %s13
  %16 = dma.vmem_to_smem %s14, 16, [#allocation3], [#allocation2]
  %17 = dma.done [#allocation2], 16
  %18 = sfence
  $region1: #{_forward_impl.1} parent=0
    #allocation4 [shape = 'u8[65536]{0}', space=vmem, size = 0x10000, scoped, tag = 'input window, operand 1']
    #allocation5 [shape = 'u8[16384]{0}', space=vmem, size = 0x4000, scoped, tag = 'output window, operand 0']
    loop: start=0, step=1, limit=6
    $region2: #{_forward_impl.1} parent=1 // loop_pre_header
      _
    $region3: #{_forward_impl.1} parent=1 // loop_header
      %s20 = sphi 0, %s24
      %p21 = scmp.ge.s32.totalorder %s20, 6
      %s30 = sphi 0, %s32
      %s33 = sphi 0, %s30
      %s34 = sphi 0, %s33
      %s50 = sphi 0, %s34
      %s54 = sphi 0, %s54
      %s56 = sphi 0, %s54
      %s57 = sphi 0, %s56
      %s71 = sphi 0, %s57
      %s75 = sphi 0, %s75
      %s77 = sphi 0, %s75
      %s78 = sphi 0, %s77
      %s92 = sphi 0, %s78
      %s96 = sphi 0, %s96
      %s98 = sphi 0, %s96
      %s99 = sphi 0, %s98
      %s113 = sphi 0, %s99
      %s117 = sphi 0, %s117
      %s119 = sphi 0, %s117
      %s120 = sphi 0, %s119
      %s134 = sphi 0, %s120
      %s138 = sphi 0, %s138
      %s140 = sphi 0, %s138
      %s141 = sphi 0, %s140
      %s155 = sphi 0, %s141
      %s159 = sphi 0, %s159
      %s161 = sphi 0, %s159
      %s162 = sphi 0, %s161
      %s176 = sphi 0, %s162
      %s182 = sphi 0, %s184
      %s185 = sphi 0, %s182
      %s186 = sphi 0, %s185
      %s202 = sphi 0, %s186
    $region4: #{_forward_impl.1} parent=1 // loop_header_branch
      %23 = sbr.rel (%p21) target = $region8
    $region5: #{_forward_impl.1} parent=1 // loop_body
      %s25 = ssub.s32 %s20, 1
      %s26 = ssub.s32 %s20, 2
      %s27 = sadd.s32 %s20, 1
      %s28 = ssub.s32 %s20, %s27
      %p29 = scmp.eq.s32.totalorder %s28, 0
      %s31 = sadd.s32 %s30, 1
      %s32 = scalar_select %p29, %s30, %s31
      %p35 = pneg %p29
      %p36 = scmp.eq.s32.totalorder %s20, 3
      %p37 = por %p35, %p36
      %p38 = scmp.ne.s32.totalorder %s30, %s33
      %p39 = scmp.eq.s32.totalorder %s20, 0
      %p40 = por %p38, %p39
      %p41 = scmp.ne.s32.totalorder %s30, %s33
      %p42 = scmp.eq.s32.totalorder %s25, 3
      %p43 = por %p41, %p42
      %p44 = scmp.ne.s32.totalorder %s33, %s34
      %p45 = scmp.eq.s32.totalorder %s25, 0
      %p46 = por %p44, %p45
      %p47 = scmp.ne.s32.totalorder %s33, %s34
      %p48 = scmp.eq.s32.totalorder %s26, 3
      %p49 = por %p47, %p48
      %p51 = scmp.ne.s32.totalorder %s34, %s50
      %p52 = scmp.eq.s32.totalorder %s26, 0
      %p53 = por %p51, %p52
      %s55 = sadd.s32 %s54, 1
      %p58 = scmp.eq.s32.totalorder %s20, 3
      %p59 = scmp.ne.s32.totalorder %s54, %s56
      %p60 = scmp.eq.s32.totalorder %s20, 0
      %p61 = por %p59, %p60
      %p62 = scmp.ne.s32.totalorder %s54, %s56
      %p63 = scmp.eq.s32.totalorder %s25, 3
      %p64 = por %p62, %p63
      %p65 = scmp.ne.s32.totalorder %s56, %s57
      %p66 = scmp.eq.s32.totalorder %s25, 0
      %p67 = por %p65, %p66
      %p68 = scmp.ne.s32.totalorder %s56, %s57
      %p69 = scmp.eq.s32.totalorder %s26, 3
      %p70 = por %p68, %p69
      %p72 = scmp.ne.s32.totalorder %s57, %s71
      %p73 = scmp.eq.s32.totalorder %s26, 0
      %p74 = por %p72, %p73
      %s76 = sadd.s32 %s75, 1
      %p79 = scmp.eq.s32.totalorder %s20, 3
      %p80 = scmp.ne.s32.totalorder %s75, %s77
      %p81 = scmp.eq.s32.totalorder %s20, 0
      %p82 = por %p80, %p81
      %p83 = scmp.ne.s32.totalorder %s75, %s77
      %p84 = scmp.eq.s32.totalorder %s25, 3
      %p85 = por %p83, %p84
      %p86 = scmp.ne.s32.totalorder %s77, %s78
      %p87 = scmp.eq.s32.totalorder %s25, 0
      %p88 = por %p86, %p87
      %p89 = scmp.ne.s32.totalorder %s77, %s78
      %p90 = scmp.eq.s32.totalorder %s26, 3
      %p91 = por %p89, %p90
      %p93 = scmp.ne.s32.totalorder %s78, %s92
      %p94 = scmp.eq.s32.totalorder %s26, 0
      %p95 = por %p93, %p94
      %s97 = sadd.s32 %s96, 1
      %p100 = scmp.eq.s32.totalorder %s20, 3
      %p101 = scmp.ne.s32.totalorder %s96, %s98
      %p102 = scmp.eq.s32.totalorder %s20, 0
      %p103 = por %p101, %p102
      %p104 = scmp.ne.s32.totalorder %s96, %s98
      %p105 = scmp.eq.s32.totalorder %s25, 3
      %p106 = por %p104, %p105
      %p107 = scmp.ne.s32.totalorder %s98, %s99
      %p108 = scmp.eq.s32.totalorder %s25, 0
      %p109 = por %p107, %p108
      %p110 = scmp.ne.s32.totalorder %s98, %s99
      %p111 = scmp.eq.s32.totalorder %s26, 3
      %p112 = por %p110, %p111
      %p114 = scmp.ne.s32.totalorder %s99, %s113
      %p115 = scmp.eq.s32.totalorder %s26, 0
      %p116 = por %p114, %p115
      %s118 = sadd.s32 %s117, 1
      %p121 = scmp.eq.s32.totalorder %s20, 3
      %p122 = scmp.ne.s32.totalorder %s117, %s119
      %p123 = scmp.eq.s32.totalorder %s20, 0
      %p124 = por %p122, %p123
      %p125 = scmp.ne.s32.totalorder %s117, %s119
      %p126 = scmp.eq.s32.totalorder %s25, 3
      %p127 = por %p125, %p126
      %p128 = scmp.ne.s32.totalorder %s119, %s120
      %p129 = scmp.eq.s32.totalorder %s25, 0
      %p130 = por %p128, %p129
      %p131 = scmp.ne.s32.totalorder %s119, %s120
      %p132 = scmp.eq.s32.totalorder %s26, 3
      %p133 = por %p131, %p132
      %p135 = scmp.ne.s32.totalorder %s120, %s134
      %p136 = scmp.eq.s32.totalorder %s26, 0
      %p137 = por %p135, %p136
      %s139 = sadd.s32 %s138, 1
      %p142 = scmp.eq.s32.totalorder %s20, 3
      %p143 = scmp.ne.s32.totalorder %s138, %s140
      %p144 = scmp.eq.s32.totalorder %s20, 0
      %p145 = por %p143, %p144
      %p146 = scmp.ne.s32.totalorder %s138, %s140
      %p147 = scmp.eq.s32.totalorder %s25, 3
      %p148 = por %p146, %p147
      %p149 = scmp.ne.s32.totalorder %s140, %s141
      %p150 = scmp.eq.s32.totalorder %s25, 0
      %p151 = por %p149, %p150
      %p152 = scmp.ne.s32.totalorder %s140, %s141
      %p153 = scmp.eq.s32.totalorder %s26, 3
      %p154 = por %p152, %p153
      %p156 = scmp.ne.s32.totalorder %s141, %s155
      %p157 = scmp.eq.s32.totalorder %s26, 0
      %p158 = por %p156, %p157
      %s160 = sadd.s32 %s159, 1
      %p163 = scmp.eq.s32.totalorder %s20, 3
      %p164 = scmp.ne.s32.totalorder %s159, %s161
      %p165 = scmp.eq.s32.totalorder %s20, 0
      %p166 = por %p164, %p165
      %p167 = scmp.ne.s32.totalorder %s159, %s161
      %p168 = scmp.eq.s32.totalorder %s25, 3
      %p169 = por %p167, %p168
      %p170 = scmp.ne.s32.totalorder %s161, %s162
      %p171 = scmp.eq.s32.totalorder %s25, 0
      %p172 = por %p170, %p171
      %p173 = scmp.ne.s32.totalorder %s161, %s162
      %p174 = scmp.eq.s32.totalorder %s26, 3
      %p175 = por %p173, %p174
      %p177 = scmp.ne.s32.totalorder %s162, %s176
      %p178 = scmp.eq.s32.totalorder %s26, 0
      %p179 = por %p177, %p178
      %s180 = ssub.s32 %s20, %s27
      %p181 = scmp.eq.s32.totalorder %s180, 0
      %s183 = sadd.s32 %s182, 1
      %s184 = scalar_select %p181, %s182, %s183
      %p187 = pneg %p181
      %p188 = scmp.eq.s32.totalorder %s20, 3
      %p189 = por %p187, %p188
      %p190 = scmp.ne.s32.totalorder %s182, %s185
      %p191 = scmp.eq.s32.totalorder %s20, 0
      %p192 = por %p190, %p191
      %p193 = scmp.ne.s32.totalorder %s182, %s185
      %p194 = scmp.eq.s32.totalorder %s25, 3
      %p195 = por %p193, %p194
      %p196 = scmp.ne.s32.totalorder %s185, %s186
      %p197 = scmp.eq.s32.totalorder %s25, 0
      %p198 = por %p196, %p197
      %p199 = scmp.ne.s32.totalorder %s185, %s186
      %p200 = scmp.eq.s32.totalorder %s26, 3
      %p201 = por %p199, %p200
      %p203 = scmp.ne.s32.totalorder %s186, %s202
      %p204 = scmp.eq.s32.totalorder %s26, 0
      %p205 = por %p203, %p204
      %p206 = scmp.le.s32.totalorder 1, %s20
      %p207 = scmp.lt.s32.totalorder %s20, 5
      %p208 = pnand %p206, %p207
      %p209 = pneg %p208
      // Predicated region
      $region9: #{_forward_impl.1} parent=5 // pred_check
        _
      $region10: #{_forward_impl.1} parent=5 // pred_check_branch
        %211 = sbr.rel (%p208) target = $region12
      $region11: #{_forward_impl.1} parent=5 // pred_region
        %s212 = ssub.s32 %s20, 1
        // Predicated region
        $region13: #{_forward_impl.1} parent=11 // pred_check
          %p213 = pneg %p67
        $region14: #{_forward_impl.1} parent=11 // pred_check_branch
          %215 = sbr.rel (%p213) target = $region16
        $region15: #{_forward_impl.1} parent=11 // pred_region
          _
        $region16: #{_forward_impl.1} parent=11 // pred_fallthru
          _
        // Predicated region
        $region17: #{_forward_impl.1} parent=11 // pred_check
          %p216 = pneg %p88
        $region18: #{_forward_impl.1} parent=11 // pred_check_branch
          %218 = sbr.rel (%p216) target = $region20
        $region19: #{_forward_impl.1} parent=11 // pred_region
          _
        $region20: #{_forward_impl.1} parent=11 // pred_fallthru
          _
        // Predicated region
        $region21: #{_forward_impl.1} parent=11 // pred_check
          %p219 = pneg %p109
        $region22: #{_forward_impl.1} parent=11 // pred_check_branch
          %221 = sbr.rel (%p219) target = $region24
        $region23: #{_forward_impl.1} parent=11 // pred_region
          _
        $region24: #{_forward_impl.1} parent=11 // pred_fallthru
          _
        // Predicated region
        $region25: #{_forward_impl.1} parent=11 // pred_check
          %p222 = pneg %p130
        $region26: #{_forward_impl.1} parent=11 // pred_check_branch
          %224 = sbr.rel (%p222) target = $region28
        $region27: #{_forward_impl.1} parent=11 // pred_region
          _
        $region28: #{_forward_impl.1} parent=11 // pred_fallthru
          _
        // Predicated region
        $region29: #{_forward_impl.1} parent=11 // pred_check
          %p225 = pneg %p151
        $region30: #{_forward_impl.1} parent=11 // pred_check_branch
          %227 = sbr.rel (%p225) target = $region32
        $region31: #{_forward_impl.1} parent=11 // pred_region
          _
        $region32: #{_forward_impl.1} parent=11 // pred_fallthru
          _
        // Predicated region
        $region33: #{_forward_impl.1} parent=11 // pred_check
          %p228 = pneg %p172
        $region34: #{_forward_impl.1} parent=11 // pred_check_branch
          %230 = sbr.rel (%p228) target = $region36
        $region35: #{_forward_impl.1} parent=11 // pred_region
          _
        $region36: #{_forward_impl.1} parent=11 // pred_fallthru
          _
      $region12: #{_forward_impl.1} parent=5 // pred_fallthru
        _
      %p231 = scmp.lt.s32.totalorder %s20, 4
      // Predicated region
      $region37: #{_forward_impl.1} parent=5 // pred_check
        %p232 = pneg %p231
      $region38: #{_forward_impl.1} parent=5 // pred_check_branch
        %234 = sbr.rel (%p232) target = $region40
      $region39: #{_forward_impl.1} parent=5 // pred_region
        // Predicated region
        $region41: #{_forward_impl.1} parent=39 // pred_check
          %p235 = pneg %p40
        $region42: #{_forward_impl.1} parent=39 // pred_check_branch
          %237 = sbr.rel (%p235) target = $region44
        $region43: #{_forward_impl.1} parent=39 // pred_region
          %s238 = sand.u32 %s30, 1
          %s239 = sand.u32 %s30, 1
          %s240 = smul.addr %s239, 64
          %s241 = scalar_lea.vmem [#allocation4], %s240
          %s242 = smul.addr %s20, 4
          %s243 = scalar_lea.vmem %s1, %s242
          // Predicated region
          $region45: #{_forward_impl.1} parent=43 // pred_check
            _
          $region46: #{_forward_impl.1} parent=43 // pred_check_branch
            %245 = sbr.rel (0) target = $region48
          $region47: #{_forward_impl.1} parent=43 // pred_region
            // Predicated region
            $region49: #{_forward_impl.1} parent=47 // pred_check
              _
            $region50: #{_forward_impl.1} parent=47 // pred_check_branch
              %247 = sbr.rel target = $region52
            $region51: #{_forward_impl.1} parent=47 // pred_region
              // Predicated region
              $region64: #{_forward_impl.1} parent=51 // pred_check
                _
              $region65: #{_forward_impl.1} parent=51 // pred_check_branch
                %292 = sbr.rel (0) target = $region67
              $region66: #{_forward_impl.1} parent=51 // pred_region
                loop: start=0, step=1, limit=1
                $region68: #{_forward_impl.1} parent=66 // loop_pre_header
                  _
                $region69: #{_forward_impl.1} parent=66 // loop_header
                  %s294 = sphi 0, %s298
                  %p295 = scmp.ge.s32.totalorder %s294, 1
                  %s299 = sphi %s243, %s243
                  %s300 = sphi %s241, %s241
                $region70: #{_forward_impl.1} parent=66 // loop_header_branch
                  %297 = sbr.rel (%p295) target = $region74
                $region71: #{_forward_impl.1} parent=66 // loop_body
                  _
                $region72: #{_forward_impl.1} parent=66 // loop_footer
                  %s298 = sadd.s32 1, %s294
                $region73: #{_forward_impl.1} parent=66 // loop_footer_branch
                  %293 = sbr.rel target = $region69
                $region74: #{_forward_impl.1} parent=66 // loop_exit
                  _
                loop: start=0, step=1, limit=1
                $region75: #{_forward_impl.1} parent=66 // loop_pre_header
                  _
                $region76: #{_forward_impl.1} parent=66 // loop_header
                  %s303 = sphi 0, %s307
                  %p304 = scmp.ge.s32.totalorder %s303, 1
                  %s308 = sphi %s243, %s243
                  %s309 = sphi %s241, %s241
                $region77: #{_forward_impl.1} parent=66 // loop_header_branch
                  %306 = sbr.rel (%p304) target = $region81
                $region78: #{_forward_impl.1} parent=66 // loop_body
                  %v310 = vld [vmem:[%s308] sm:$0xf]
                  %311 = vst [vmem:[%s309] sm:$0xf] %v310
                  %v312 = vld [vmem:[%s308 + $0x10] sm:$0xf]
                  %313 = vst [vmem:[%s309 + $0x4] sm:$0xf] %v312
                  %v314 = vld [vmem:[%s308 + $0x20] sm:$0xf]
                  %315 = vst [vmem:[%s309 + $0x8] sm:$0xf] %v314
                  %v316 = vld [vmem:[%s308 + $0x30] sm:$0xf]
                  %317 = vst [vmem:[%s309 + $0xc] sm:$0xf] %v316
                  %v318 = vld [vmem:[%s308 + $0x40] sm:$0xf]
                  %319 = vst [vmem:[%s309 + $0x10] sm:$0xf] %v318
                  %v320 = vld [vmem:[%s308 + $0x50] sm:$0xf]
                  %321 = vst [vmem:[%s309 + $0x14] sm:$0xf] %v320
                  %v322 = vld [vmem:[%s308 + $0x60] sm:$0xf]
                  %323 = vst [vmem:[%s309 + $0x18] sm:$0xf] %v322
                  %v324 = vld [vmem:[%s308 + $0x70] sm:$0xf]
                  %325 = vst [vmem:[%s309 + $0x1c] sm:$0xf] %v324
                  %v326 = vld [vmem:[%s308 + $0x80] sm:$0xf]
                  %327 = vst [vmem:[%s309 + $0x20] sm:$0xf] %v326
                  %v328 = vld [vmem:[%s308 + $0x90] sm:$0xf]
                  %329 = vst [vmem:[%s309 + $0x24] sm:$0xf] %v328
                  %v330 = vld [vmem:[%s308 + $0xa0] sm:$0xf]
                  %331 = vst [vmem:[%s309 + $0x28] sm:$0xf] %v330
                  %v332 = vld [vmem:[%s308 + $0xb0] sm:$0xf]
                  %333 = vst [vmem:[%s309 + $0x2c] sm:$0xf] %v332
                  %v334 = vld [vmem:[%s308 + $0xc0] sm:$0xf]
                  %335 = vst [vmem:[%s309 + $0x30] sm:$0xf] %v334
                  %v336 = vld [vmem:[%s308 + $0xd0] sm:$0xf]
                  %337 = vst [vmem:[%s309 + $0x34] sm:$0xf] %v336
                  %v338 = vld [vmem:[%s308 + $0xe0] sm:$0xf]
                  %339 = vst [vmem:[%s309 + $0x38] sm:$0xf] %v338
                  %v340 = vld [vmem:[%s308 + $0xf0] sm:$0xf]
                  %341 = vst [vmem:[%s309 + $0x3c] sm:$0xf] %v340
                $region79: #{_forward_impl.1} parent=66 // loop_footer
                  %s307 = sadd.s32 1, %s303
                $region80: #{_forward_impl.1} parent=66 // loop_footer_branch
                  %302 = sbr.rel target = $region76
                $region81: #{_forward_impl.1} parent=66 // loop_exit
                  _
              $region67: #{_forward_impl.1} parent=51 // pred_fallthru
                _
            $region52: #{_forward_impl.1} parent=47 // pred_fallthru
              _
            // Predicated region
            $region53: #{_forward_impl.1} parent=47 // pred_check
              _
            $region54: #{_forward_impl.1} parent=47 // pred_check_branch
              %249 = sbr.rel (0) target = $region56
            $region55: #{_forward_impl.1} parent=47 // pred_region
              loop: start=0, step=1, limit=1
              $region57: #{_forward_impl.1} parent=55 // loop_pre_header
                _
              $region58: #{_forward_impl.1} parent=55 // loop_header
                %s252 = sphi 0, %s256
                %p253 = scmp.ge.s32.totalorder %s252, 1
                %s257 = sphi %s243, %s243
                %s258 = sphi %s241, %s241
              $region59: #{_forward_impl.1} parent=55 // loop_header_branch
                %255 = sbr.rel (%p253) target = $region63
              $region60: #{_forward_impl.1} parent=55 // loop_body
                %v259 = vld [vmem:[%s257] sm:$0xf]
                %260 = vst [vmem:[%s258] sm:$0xf] %v259
                %v261 = vld [vmem:[%s257 + $0x10] sm:$0xf]
                %262 = vst [vmem:[%s258 + $0x4] sm:$0xf] %v261
                %v263 = vld [vmem:[%s257 + $0x20] sm:$0xf]
                %264 = vst [vmem:[%s258 + $0x8] sm:$0xf] %v263
                %v265 = vld [vmem:[%s257 + $0x30] sm:$0xf]
                %266 = vst [vmem:[%s258 + $0xc] sm:$0xf] %v265
                %v267 = vld [vmem:[%s257 + $0x40] sm:$0xf]
                %268 = vst [vmem:[%s258 + $0x10] sm:$0xf] %v267
                %v269 = vld [vmem:[%s257 + $0x50] sm:$0xf]
                %270 = vst [vmem:[%s258 + $0x14] sm:$0xf] %v269
                %v271 = vld [vmem:[%s257 + $0x60] sm:$0xf]
                %272 = vst [vmem:[%s258 + $0x18] sm:$0xf] %v271
                %v273 = vld [vmem:[%s257 + $0x70] sm:$0xf]
                %274 = vst [vmem:[%s258 + $0x1c] sm:$0xf] %v273
                %v275 = vld [vmem:[%s257 + $0x80] sm:$0xf]
                %276 = vst [vmem:[%s258 + $0x20] sm:$0xf] %v275
                %v277 = vld [vmem:[%s257 + $0x90] sm:$0xf]
                %278 = vst [vmem:[%s258 + $0x24] sm:$0xf] %v277
                %v279 = vld [vmem:[%s257 + $0xa0] sm:$0xf]
                %280 = vst [vmem:[%s258 + $0x28] sm:$0xf] %v279
                %v281 = vld [vmem:[%s257 + $0xb0] sm:$0xf]
                %282 = vst [vmem:[%s258 + $0x2c] sm:$0xf] %v281
                %v283 = vld [vmem:[%s257 + $0xc0] sm:$0xf]
                %284 = vst [vmem:[%s258 + $0x30] sm:$0xf] %v283
                %v285 = vld [vmem:[%s257 + $0xd0] sm:$0xf]
                %286 = vst [vmem:[%s258 + $0x34] sm:$0xf] %v285
                %v287 = vld [vmem:[%s257 + $0xe0] sm:$0xf]
                %288 = vst [vmem:[%s258 + $0x38] sm:$0xf] %v287
                %v289 = vld [vmem:[%s257 + $0xf0] sm:$0xf]
                %290 = vst [vmem:[%s258 + $0x3c] sm:$0xf] %v289
              $region61: #{_forward_impl.1} parent=55 // loop_footer
                %s256 = sadd.s32 1, %s252
              $region62: #{_forward_impl.1} parent=55 // loop_footer_branch
                %251 = sbr.rel target = $region58
              $region63: #{_forward_impl.1} parent=55 // loop_exit
                _
            $region56: #{_forward_impl.1} parent=47 // pred_fallthru
              _
          $region48: #{_forward_impl.1} parent=43 // pred_fallthru
            _
          %342 = vnop
        $region44: #{_forward_impl.1} parent=39 // pred_fallthru
          _
      $region40: #{_forward_impl.1} parent=5 // pred_fallthru
        _
      %p343 = scmp.le.s32.totalorder 1, %s20
      %p344 = scmp.lt.s32.totalorder %s20, 5
      %p345 = pnand %p343, %p344
      %p346 = pneg %p345
      // Predicated region
      $region82: #{_forward_impl.1} parent=5 // pred_check
        _
      $region83: #{_forward_impl.1} parent=5 // pred_check_branch
        %348 = sbr.rel (%p345) target = $region85
      $region84: #{_forward_impl.1} parent=5 // pred_region
        %s349 = ssub.s32 %s20, 1
        %s350 = sand.u32 %s33, 1
        %s351 = sand.u32 %s33, 1
        %s352 = smul.addr %s351, 64
        %s353 = scalar_lea.vmem [#allocation4], %s352
        // Predicated region
        $region86: #{_forward_impl.1} parent=84 // pred_check
          %p354 = pneg %p46
        $region87: #{_forward_impl.1} parent=84 // pred_check_branch
          %356 = sbr.rel (%p354) target = $region89
        $region88: #{_forward_impl.1} parent=84 // pred_region
          _
        $region89: #{_forward_impl.1} parent=84 // pred_fallthru
          _
        %s357 = sand.u32 %s33, 1
        %s358 = sand.u32 %s33, 1
        %s359 = smul.addr %s358, 64
        %s360 = scalar_lea.vmem [#allocation4], %s359
        %p361 = pneg %p46
        %p362 = pneg %p43
        %p363 = pneg %p67
        %p364 = pneg %p64
        %p365 = pneg %p88
        %p366 = pneg %p85
        %p367 = pneg %p109
        %p368 = pneg %p106
        %p369 = pneg %p130
        %p370 = pneg %p127
        %p371 = pneg %p151
        %p372 = pneg %p148
        %p373 = pneg %p172
        %p374 = pneg %p169
        %p375 = pneg %p198
        %p376 = pneg %p195
        %s377 = sand.u32 %s185, 1
        %s378 = sand.u32 %s185, 1
        %s379 = smul.addr %s378, 16
        %s380 = scalar_lea.vmem [#allocation5], %s379
        %s382 = sld [smem:[#allocation3 + %s25]]
        %v383 = vld [vmem:[%s353] sm:$0xf]
        %v384 = vld [vmem:[%s353 + $0x4] sm:$0xf]
        %v385 = vld [vmem:[%s353 + $0x8] sm:$0xf]
        %v386 = vld [vmem:[%s353 + $0xc] sm:$0xf]
        %v387 = vld [vmem:[%s353 + $0x10] sm:$0xf]
        %v388 = vld [vmem:[%s353 + $0x14] sm:$0xf]
        %v389 = vld [vmem:[%s353 + $0x18] sm:$0xf]
        %v390 = vld [vmem:[%s353 + $0x1c] sm:$0xf]
        %v391 = vld [vmem:[%s353 + $0x20] sm:$0xf]
        %v392 = vld [vmem:[%s353 + $0x24] sm:$0xf]
        %v393 = vld [vmem:[%s353 + $0x28] sm:$0xf]
        %v394 = vld [vmem:[%s353 + $0x2c] sm:$0xf]
        %v395 = vld [vmem:[%s353 + $0x30] sm:$0xf]
        %v396 = vld [vmem:[%s353 + $0x34] sm:$0xf]
        %v397 = vld [vmem:[%s353 + $0x38] sm:$0xf]
        %v398 = vld [vmem:[%s353 + $0x3c] sm:$0xf]
        %s399 = smul.u32 %s382, 4
        %s400 = smul.addr %s399, 4
        %s401 = scalar_lea.vmem %s2, %s400
        %v402 = vld [vmem:[%s401] sm:$0xf]
        %v403 = vld [vmem:[%s401 + $0x4] sm:$0xf]
        %v404 = vld [vmem:[%s401 + $0x8] sm:$0xf]
        %v405 = vld [vmem:[%s401 + $0xc] sm:$0xf]
        %s406 = smul.u32 %s382, 32
        %s407 = scalar_lea.vmem %s3, %s406
        %v408 = vld [vmem:[%s407] sm:$0xff]
        %v409 = vld [vmem:[%s407 + $0x8] sm:$0xff]
        %v410 = vld [vmem:[%s407 + $0x10] sm:$0xff]
        %v411 = vld [vmem:[%s407 + $0x18] sm:$0xff]
        %413 = vset.pattern.permute.xlu0 0
        %414 = vperm.xlu0 %413, %v408
        %v415 = vpop.permute.xlu0 %414
        %418 = vset.pattern.permute.xlu0 0
        %419 = vperm.xlu0 %418, %v409
        %v420 = vpop.permute.xlu0 %419
        %423 = vset.pattern.permute.xlu0 0
        %424 = vperm.xlu0 %423, %v410
        %v425 = vpop.permute.xlu0 %424
        %428 = vset.pattern.permute.xlu0 0
        %429 = vperm.xlu0 %428, %v411
        %v430 = vpop.permute.xlu0 %429
        %v436 = vunpack.c.l.b16 %v402
        %v437 = vunpack.c.l.b16 %v403
        %v438 = vunpack.c.l.b16 %v404
        %v439 = vunpack.c.l.b16 %v405
        %v440 = vpack.c.b16 %v437, %v436
        %v441 = vpack.c.b16 %v439, %v438
        %v460 = vunpack.c.l.b16 %v383
        %v461 = vunpack.c.l.b16 %v384
        %v462 = vunpack.c.l.b16 %v385
        %v463 = vunpack.c.l.b16 %v386
        %v464 = vunpack.c.l.b16 %v387
        %v465 = vunpack.c.l.b16 %v388
        %v466 = vunpack.c.l.b16 %v389
        %v467 = vunpack.c.l.b16 %v390
        %v468 = vunpack.c.l.b16 %v391
        %v469 = vunpack.c.l.b16 %v392
        %v470 = vunpack.c.l.b16 %v393
        %v471 = vunpack.c.l.b16 %v394
        %v472 = vunpack.c.l.b16 %v395
        %v473 = vunpack.c.l.b16 %v396
        %v474 = vunpack.c.l.b16 %v397
        %v475 = vunpack.c.l.b16 %v398
        %v476 = vpack.c.b16 %v461, %v460
        %v477 = vpack.c.b16 %v463, %v462
        %v478 = vpack.c.b16 %v465, %v464
        %v479 = vpack.c.b16 %v467, %v466
        %v480 = vpack.c.b16 %v469, %v468
        %v481 = vpack.c.b16 %v471, %v470
        %v482 = vpack.c.b16 %v473, %v472
        %v483 = vpack.c.b16 %v475, %v474
        %492 = vmatprep.subr.bf16.mxu0 0
        %493 = vmatpush1.bf16.msra.mxu0 %v476
        %494 = vmatprep.subr.bf16.mxu0 0
        %495 = vmatpush1.bf16.msra.mxu0 %v477
        %496 = vmatprep.subr.bf16.mxu0 0
        %497 = vmatpush1.bf16.msra.mxu0 %v478
        %498 = vmatprep.subr.bf16.mxu0 0
        %499 = vmatpush1.bf16.msra.mxu0 %v479
        %500 = vmatprep.subr.bf16.mxu0 0
        %501 = vmatpush1.bf16.msra.mxu0 %v480
        %502 = vmatprep.subr.bf16.mxu0 0
        %503 = vmatpush1.bf16.msra.mxu0 %v481
        %504 = vmatprep.subr.bf16.mxu0 0
        %505 = vmatpush1.bf16.msra.mxu0 %v482
        %506 = vmatprep.subr.bf16.mxu0 0
        %507 = vmatpush1.bf16.msra.mxu0 %v483
        %508 = vmatprep.subr.bf16.mxu0 0
        %509 = vmatpush1.bf16.msra.mxu0 0
        %510 = vmatprep.subr.bf16.mxu0 0
        %511 = vmatpush1.bf16.msra.mxu0 0
        %512 = vmatprep.subr.bf16.mxu0 0
        %513 = vmatpush1.bf16.msra.mxu0 0
        %514 = vmatprep.subr.bf16.mxu0 0
        %515 = vmatpush1.bf16.msra.mxu0 0
        %516 = vmatprep.subr.bf16.mxu0 0
        %517 = vmatpush1.bf16.msra.mxu0 0
        %518 = vmatprep.subr.bf16.mxu0 0
        %519 = vmatpush1.bf16.msra.mxu0 0
        %520 = vmatprep.subr.bf16.mxu0 0
        %521 = vmatpush1.bf16.msra.mxu0 0
        %522 = vmatprep.subr.bf16.mxu0 0
        %523 = vmatpush1.bf16.msra.mxu0 0
        %524 = vmatprep.mubr.bf16.mxu0 0
        %525 = vmatmul.mubr.bf16.gmra.mrb[0].mxu0 %v440
        %v526 = vpop.f32.mrb[0].mxu0
        %v527 = vadd.f32 %v415, %v526
        %v528 = vpop.f32.mrb[0].mxu0
        %v529 = vpop.f32.mrb[0].mxu0
        %v530 = vadd.f32 %v420, %v529
        %v531 = vpop.f32.mrb[0].mxu0
        %532 = vmatprep.mubr.bf16.mxu0 0
        %533 = vmatmul.mubr.bf16.gmra.mrb[0].mxu0 %v441
        %v534 = vpop.f32.mrb[0].mxu0
        %v535 = vadd.f32 %v425, %v534
        %v536 = vpop.f32.mrb[0].mxu0
        %v537 = vpop.f32.mrb[0].mxu0
        %v538 = vadd.f32 %v430, %v537
        %v539 = vpop.f32.mrb[0].mxu0
        %540 = vdwg.mxu0
        %v541 = vmax.f32 %v527, 0.0
        %v542 = vmax.f32 %v530, 0.0
        %v543 = vmax.f32 %v535, 0.0
        %v544 = vmax.f32 %v538, 0.0
        %v545 = vpack.c.bf16 %v542, %v541
        %v546 = vpack.c.bf16 %v544, %v543
        %s547 = smul.addr %s399, 4
        %s548 = scalar_lea.vmem %s4, %s547
        %v549 = vld [vmem:[%s548] sm:$0xf]
        %v550 = vld [vmem:[%s548 + $0x4] sm:$0xf]
        %v551 = vld [vmem:[%s548 + $0x8] sm:$0xf]
        %v552 = vld [vmem:[%s548 + $0xc] sm:$0xf]
        %s553 = scalar_lea.vmem %s5, %s406
        %v554 = vld [vmem:[%s553] sm:$0xff]
        %v555 = vld [vmem:[%s553 + $0x8] sm:$0xff]
        %v556 = vld [vmem:[%s553 + $0x10] sm:$0xff]
        %v557 = vld [vmem:[%s553 + $0x18] sm:$0xff]
        %559 = vset.pattern.permute.xlu0 0
        %560 = vperm.xlu0 %559, %v554
        %v561 = vpop.permute.xlu0 %560
        %564 = vset.pattern.permute.xlu0 0
        %565 = vperm.xlu0 %564, %v555
        %v566 = vpop.permute.xlu0 %565
        %569 = vset.pattern.permute.xlu0 0
        %570 = vperm.xlu0 %569, %v556
        %v571 = vpop.permute.xlu0 %570
        %574 = vset.pattern.permute.xlu0 0
        %575 = vperm.xlu0 %574, %v557
        %v576 = vpop.permute.xlu0 %575
        %v582 = vunpack.c.l.b16 %v549
        %v583 = vunpack.c.l.b16 %v550
        %v584 = vunpack.c.l.b16 %v551
        %v585 = vunpack.c.l.b16 %v552
        %v586 = vpack.c.b16 %v583, %v582
        %v587 = vpack.c.b16 %v585, %v584
        %vm588 = vcmask 261120
        %v590 = vsel %vm588, %v586, 0
        %v593 = vsel %vm588, %v587, 0
        %595 = vmatprep.subr.bf16.mxu0 0
        %596 = vmatpush1.bf16.msra.mxu0 %v545
        %597 = vmatprep.subr.bf16.mxu0 0
        %598 = vmatpush1.bf16.msra.mxu0 %v546
        %599 = vmatprep.subr.bf16.mxu0 0
        %600 = vmatpush1.bf16.msra.mxu0 0
        %601 = vmatprep.subr.bf16.mxu0 0
        %602 = vmatpush1.bf16.msra.mxu0 0
        %603 = vmatprep.subr.bf16.mxu0 0
        %604 = vmatpush1.bf16.msra.mxu0 0
        %605 = vmatprep.subr.bf16.mxu0 0
        %606 = vmatpush1.bf16.msra.mxu0 0
        %607 = vmatprep.subr.bf16.mxu0 0
        %608 = vmatpush1.bf16.msra.mxu0 0
        %609 = vmatprep.subr.bf16.mxu0 0
        %610 = vmatpush1.bf16.msra.mxu0 0
        %611 = vmatprep.subr.bf16.mxu0 0
        %612 = vmatpush1.bf16.msra.mxu0 0
        %613 = vmatprep.subr.bf16.mxu0 0
        %614 = vmatpush1.bf16.msra.mxu0 0
        %615 = vmatprep.subr.bf16.mxu0 0
        %616 = vmatpush1.bf16.msra.mxu0 0
        %617 = vmatprep.subr.bf16.mxu0 0
        %618 = vmatpush1.bf16.msra.mxu0 0
        %619 = vmatprep.subr.bf16.mxu0 0
        %620 = vmatpush1.bf16.msra.mxu0 0
        %621 = vmatprep.subr.bf16.mxu0 0
        %622 = vmatpush1.bf16.msra.mxu0 0
        %623 = vmatprep.subr.bf16.mxu0 0
        %624 = vmatpush1.bf16.msra.mxu0 0
        %625 = vmatprep.subr.bf16.mxu0 0
        %626 = vmatpush1.bf16.msra.mxu0 0
        %627 = vmatprep.mubr.bf16.mxu0 0
        %628 = vmatmul.mubr.bf16.gmra.mrb[0].mxu0 %v590
        %v629 = vpop.f32.mrb[0].mxu0
        %v630 = vadd.f32 %v561, %v629
        %v631 = vpop.f32.mrb[0].mxu0
        %v632 = vpop.f32.mrb[0].mxu0
        %v633 = vadd.f32 %v566, %v632
        %v634 = vpop.f32.mrb[0].mxu0
        %635 = vmatprep.mubr.bf16.mxu0 0
        %636 = vmatmul.mubr.bf16.gmra.mrb[0].mxu0 %v593
        %v637 = vpop.f32.mrb[0].mxu0
        %v638 = vadd.f32 %v571, %v637
        %v639 = vpop.f32.mrb[0].mxu0
        %v640 = vpop.f32.mrb[0].mxu0
        %v641 = vadd.f32 %v576, %v640
        %v642 = vpop.f32.mrb[0].mxu0
        %643 = vdwg.mxu0
        %v644 = vmax.f32 %v630, 0.0
        %v645 = vmax.f32 %v633, 0.0
        %v646 = vmax.f32 %v638, 0.0
        %v647 = vmax.f32 %v641, 0.0
        %v648 = vpack.c.bf16 %v645, %v644
        %v649 = vpack.c.bf16 %v647, %v646
        %s650 = smul.u32 %s382, 2
        %s651 = smul.addr %s650, 4
        %s652 = scalar_lea.vmem %s6, %s651
        %v653 = vld [vmem:[%s652] sm:$0xf]
        %v654 = vld [vmem:[%s652 + $0x4] sm:$0xf]
        %s655 = smul.u32 %s382, 16
        %s656 = scalar_lea.vmem %s7, %s655
        %v657 = vld [vmem:[%s656] sm:$0xff]
        %v658 = vld [vmem:[%s656 + $0x8] sm:$0xff]
        %660 = vset.pattern.permute.xlu0 0
        %661 = vperm.xlu0 %660, %v657
        %v662 = vpop.permute.xlu0 %661
        %665 = vset.pattern.permute.xlu0 0
        %666 = vperm.xlu0 %665, %v658
        %v667 = vpop.permute.xlu0 %666
        %v671 = vunpack.c.l.b16 %v653
        %v672 = vunpack.c.l.b16 %v654
        %v673 = vpack.c.b16 %v672, %v671
        %v675 = vsel %vm588, %v673, 0
        %677 = vmatprep.subr.bf16.mxu0 0
        %678 = vmatpush1.bf16.msra.mxu0 %v648
        %679 = vmatprep.subr.bf16.mxu0 0
        %680 = vmatpush1.bf16.msra.mxu0 %v649
        %681 = vmatprep.subr.bf16.mxu0 0
        %682 = vmatpush1.bf16.msra.mxu0 0
        %683 = vmatprep.subr.bf16.mxu0 0
        %684 = vmatpush1.bf16.msra.mxu0 0
        %685 = vmatprep.subr.bf16.mxu0 0
        %686 = vmatpush1.bf16.msra.mxu0 0
        %687 = vmatprep.subr.bf16.mxu0 0
        %688 = vmatpush1.bf16.msra.mxu0 0
        %689 = vmatprep.subr.bf16.mxu0 0
        %690 = vmatpush1.bf16.msra.mxu0 0
        %691 = vmatprep.subr.bf16.mxu0 0
        %692 = vmatpush1.bf16.msra.mxu0 0
        %693 = vmatprep.subr.bf16.mxu0 0
        %694 = vmatpush1.bf16.msra.mxu0 0
        %695 = vmatprep.subr.bf16.mxu0 0
        %696 = vmatpush1.bf16.msra.mxu0 0
        %697 = vmatprep.subr.bf16.mxu0 0
        %698 = vmatpush1.bf16.msra.mxu0 0
        %699 = vmatprep.subr.bf16.mxu0 0
        %700 = vmatpush1.bf16.msra.mxu0 0
        %701 = vmatprep.subr.bf16.mxu0 0
        %702 = vmatpush1.bf16.msra.mxu0 0
        %703 = vmatprep.subr.bf16.mxu0 0
        %704 = vmatpush1.bf16.msra.mxu0 0
        %705 = vmatprep.subr.bf16.mxu0 0
        %706 = vmatpush1.bf16.msra.mxu0 0
        %707 = vmatprep.subr.bf16.mxu0 0
        %708 = vmatpush1.bf16.msra.mxu0 0
        %709 = vmatprep.mubr.bf16.mxu0 0
        %710 = vmatmul.mubr.bf16.gmra.mrb[0].mxu0 %v675
        %v711 = vpop.f32.mrb[0].mxu0
        %v712 = vadd.f32 %v662, %v711
        %v713 = vpop.f32.mrb[0].mxu0
        %v714 = vpop.f32.mrb[0].mxu0
        %v715 = vadd.f32 %v667, %v714
        %v716 = vpop.f32.mrb[0].mxu0
        %717 = vdwg.mxu0
        %718 = vst [vmem:[%s380] sm:$0xff] %v712
        %719 = vst [vmem:[%s380 + $0x8] sm:$0xff] %v715
        %s720 = sand.u32 %s185, 1
        %s721 = sand.u32 %s185, 1
        %s722 = smul.addr %s721, 16
        %s723 = scalar_lea.vmem [#allocation5], %s722
        // Predicated region
        $region90: #{_forward_impl.1} parent=84 // pred_check
          %p724 = pneg %p195
        $region91: #{_forward_impl.1} parent=84 // pred_check_branch
          %726 = sbr.rel (%p724) target = $region93
        $region92: #{_forward_impl.1} parent=84 // pred_region
          %s727 = smul.addr %s25, 8
          %s728 = scalar_lea.vmem %s8, %s727
          // Predicated region
          $region94: #{_forward_impl.1} parent=92 // pred_check
            _
          $region95: #{_forward_impl.1} parent=92 // pred_check_branch
            %730 = sbr.rel (0) target = $region97
          $region96: #{_forward_impl.1} parent=92 // pred_region
            // Predicated region
            $region98: #{_forward_impl.1} parent=96 // pred_check
              _
            $region99: #{_forward_impl.1} parent=96 // pred_check_branch
              %732 = sbr.rel (0) target = $region101
            $region100: #{_forward_impl.1} parent=96 // pred_region
              // Predicated region
              $region113: #{_forward_impl.1} parent=100 // pred_check
                _
              $region114: #{_forward_impl.1} parent=100 // pred_check_branch
                %749 = sbr.rel (0) target = $region116
              $region115: #{_forward_impl.1} parent=100 // pred_region
                loop: start=0, step=1, limit=1
                $region117: #{_forward_impl.1} parent=115 // loop_pre_header
                  _
                $region118: #{_forward_impl.1} parent=115 // loop_header
                  %s751 = sphi 0, %s755
                  %p752 = scmp.ge.s32.totalorder %s751, 1
                  %s756 = sphi %s723, %s723
                  %s757 = sphi %s728, %s728
                $region119: #{_forward_impl.1} parent=115 // loop_header_branch
                  %754 = sbr.rel (%p752) target = $region123
                $region120: #{_forward_impl.1} parent=115 // loop_body
                  %v758 = vld [vmem:[%s756] sm:$0xff]
                  %759 = vst [vmem:[%s757] sm:$0xff] %v758
                  %v760 = vld [vmem:[%s756 + $0x8] sm:$0xff]
                  %761 = vst [vmem:[%s757 + $0x20] sm:$0xff] %v760
                $region121: #{_forward_impl.1} parent=115 // loop_footer
                  %s755 = sadd.s32 1, %s751
                $region122: #{_forward_impl.1} parent=115 // loop_footer_branch
                  %750 = sbr.rel target = $region118
                $region123: #{_forward_impl.1} parent=115 // loop_exit
                  _
              $region116: #{_forward_impl.1} parent=100 // pred_fallthru
                _
              // Predicated region
              $region124: #{_forward_impl.1} parent=100 // pred_check
                _
              $region125: #{_forward_impl.1} parent=100 // pred_check_branch
                %763 = sbr.rel target = $region127
              $region126: #{_forward_impl.1} parent=100 // pred_region
                _
              $region127: #{_forward_impl.1} parent=100 // pred_fallthru
                _
            $region101: #{_forward_impl.1} parent=96 // pred_fallthru
              _
            // Predicated region
            $region102: #{_forward_impl.1} parent=96 // pred_check
              _
            $region103: #{_forward_impl.1} parent=96 // pred_check_branch
              %734 = sbr.rel target = $region105
            $region104: #{_forward_impl.1} parent=96 // pred_region
              loop: start=0, step=1, limit=1
              $region106: #{_forward_impl.1} parent=104 // loop_pre_header
                _
              $region107: #{_forward_impl.1} parent=104 // loop_header
                %s737 = sphi 0, %s741
                %p738 = scmp.ge.s32.totalorder %s737, 1
                %s742 = sphi %s723, %s723
                %s743 = sphi %s728, %s728
              $region108: #{_forward_impl.1} parent=104 // loop_header_branch
                %740 = sbr.rel (%p738) target = $region112
              $region109: #{_forward_impl.1} parent=104 // loop_body
                %v744 = vld [vmem:[%s742] sm:$0xff]
                %745 = vst [vmem:[%s743] sm:$0xff] %v744
                %v746 = vld [vmem:[%s742 + $0x8] sm:$0xff]
                %747 = vst [vmem:[%s743 + $0x20] sm:$0xff] %v746
              $region110: #{_forward_impl.1} parent=104 // loop_footer
                %s741 = sadd.s32 1, %s737
              $region111: #{_forward_impl.1} parent=104 // loop_footer_branch
                %736 = sbr.rel target = $region107
              $region112: #{_forward_impl.1} parent=104 // loop_exit
                _
            $region105: #{_forward_impl.1} parent=96 // pred_fallthru
              _
          $region97: #{_forward_impl.1} parent=92 // pred_fallthru
            _
          %764 = vnop
        $region93: #{_forward_impl.1} parent=84 // pred_fallthru
          _
      $region85: #{_forward_impl.1} parent=5 // pred_fallthru
        _
      %p765 = scmp.le.s32.totalorder 2, %s20
      // Predicated region
      $region128: #{_forward_impl.1} parent=5 // pred_check
        %p766 = pneg %p765
      $region129: #{_forward_impl.1} parent=5 // pred_check_branch
        %768 = sbr.rel (%p766) target = $region131
      $region130: #{_forward_impl.1} parent=5 // pred_region
        %s769 = ssub.s32 %s20, 2
        // Predicated region
        $region132: #{_forward_impl.1} parent=130 // pred_check
          %p770 = pneg %p201
        $region133: #{_forward_impl.1} parent=130 // pred_check_branch
          %772 = sbr.rel (%p770) target = $region135
        $region134: #{_forward_impl.1} parent=130 // pred_region
          %s773 = sand.u32 %s186, 1
          %s774 = sand.u32 %s186, 1
          %s775 = smul.addr %s774, 16
          %s776 = scalar_lea.vmem [#allocation5], %s775
        $region135: #{_forward_impl.1} parent=130 // pred_fallthru
          _
      $region131: #{_forward_impl.1} parent=5 // pred_fallthru
        _
    $region6: #{_forward_impl.1} parent=1 // loop_footer
      %s24 = sadd.s32 1, %s20
    $region7: #{_forward_impl.1} parent=1 // loop_footer_branch
      %19 = sbr.rel target = $region3
    $region8: #{_forward_impl.1} parent=1 // loop_exit
      _

</llo_original>
